<compile_context>
chip_gen: v6e
topology: v6e:2x2x1
jax: 0.10.0
libtpu: 0.0.40
codegen_flags: <defaults>
</compile_context>

<pallas_src>
import functools

import jax
import jax.numpy as jnp
from jax.experimental import pallas as pl
from jax.experimental.pallas import tpu as pltpu

EPS = 1e-5  # PyTorch BatchNorm1d default eps


# --------------------------------------------------------------------------
# Fused Pallas kernel: [bf16 matmul -> BN(train) -> ReLU] x num_layers
# --------------------------------------------------------------------------
def _fused_mlp_bn_relu_kernel(num_layers, *refs):
    # refs = (x_ref, [w_ref, gamma_ref, beta_ref] * num_layers, o_ref)
    #   x:      (B, D0)        bf16
    #   w_l:    (D_{l-1}, D_l) bf16   (PyTorch weight already transposed)
    #   gamma:  (1, D_l)       f32
    #   beta:   (1, D_l)       f32
    #   out:    (B, D_last)    f32
    x_ref = refs[0]
    o_ref = refs[-1]
    layer_refs = refs[1:-1]

    h = x_ref[...]  # bf16 activation fed to the MXU
    for l in range(num_layers):
        w_ref, g_ref, b_ref = layer_refs[3 * l:3 * l + 3]

        # Linear (bias omitted: it is a per-feature constant and is cancelled
        # exactly by the training-mode BatchNorm mean subtraction below).
        y = jnp.dot(h, w_ref[...], preferred_element_type=jnp.float32)

        # BatchNorm1d, training mode, biased variance — single reduction pass:
        # var = E[y^2] - mean^2, then fold gamma/beta/mean/var into one
        # per-feature scale s and shift t so the epilogue is z = y*s + t.
        inv_m = 1.0 / y.shape[0]
        mean = jnp.sum(y, axis=0, keepdims=True) * inv_m
        meansq = jnp.sum(y * y, axis=0, keepdims=True) * inv_m
        var = meansq - mean * mean
        s = g_ref[...] * jax.lax.rsqrt(var + EPS)     # rsqrt -> EUP slot
        t = b_ref[...] - mean * s
        z = jnp.maximum(y * s + t, 0.0)               # ReLU

        if l + 1 < num_layers:
            h = z.astype(jnp.bfloat16)                # next matmul operand
        else:
            o_ref[...] = z                            # f32, lane-dense write


# --------------------------------------------------------------------------
# Wrapper: one pallas_call for the whole encoder (no grid — everything fits
# in VMEM at these sizes; intermediates never touch HBM).
# --------------------------------------------------------------------------
def mfm_encoder_forward(x, params):
    B = x.shape[0]
    num_layers = len(params)

    args = [x.astype(jnp.bfloat16)]
    for (w, _b, gamma, beta) in params:
        # PyTorch Linear weight is (out, in); pass (in, out) for x @ W.
        args.append(jnp.transpose(w).astype(jnp.bfloat16))
        args.append(gamma.reshape(1, -1).astype(jnp.float32))
        args.append(beta.reshape(1, -1).astype(jnp.float32))

    out_dim = params[-1][0].shape[0]
    kernel = functools.partial(_fused_mlp_bn_relu_kernel, num_layers)
    return pl.pallas_call(
        kernel,
        out_shape=jax.ShapeDtypeStruct((B, out_dim), jnp.float32),
        in_specs=[pl.BlockSpec(memory_space=pltpu.MemorySpace.VMEM)] * len(args),
        out_specs=pl.BlockSpec(memory_space=pltpu.MemorySpace.VMEM),
    )(*args)
    # TODO(synk): at realistic (large-batch) sizes, add a grid over the batch
    # with a two-phase BN (sum/sumsq accumulators + normalize pass) so it fits
    # v7x's 64 MiB VMEM and shards across its two TensorCores.


# --------------------------------------------------------------------------
# Parameter init (deterministic, synthetic) + pure-JAX f32 reference
# --------------------------------------------------------------------------
def init_params(key, in_features, hidden_dims):
    params = []
    d_in = in_features
    for d_out in hidden_dims:
        key, k1, k2, k3, k4 = jax.random.split(key, 5)
        w = jax.random.normal(k1, (d_out, d_in), jnp.float32) / jnp.sqrt(d_in)
        b = 0.05 * jax.random.normal(k2, (d_out,), jnp.float32)
        gamma = 1.0 + 0.1 * jax.random.normal(k3, (d_out,), jnp.float32)
        beta = 0.1 * jax.random.normal(k4, (d_out,), jnp.float32)
        params.append((w, b, gamma, beta))
        d_in = d_out
    return params


def reference_forward(x, params):
    h = x
    for (w, b, gamma, beta) in params:
        y = h @ w.T + b                                   # Linear (with bias)
        mean = jnp.mean(y, axis=0, keepdims=True)         # BN1d, training mode
        var = jnp.mean(jnp.square(y - mean), axis=0, keepdims=True)
        y = (y - mean) * jax.lax.rsqrt(var + EPS)
        y = y * gamma.reshape(1, -1) + beta.reshape(1, -1)
        h = jnp.maximum(y, 0.0)                           # ReLU
    return h


if __name__ == "__main__":
    # Small shapes consistent with the module: a batch of 8 feature vectors of
    # dim 32, hidden_dims=[32, 64, 128] (final dim 128 -> lane-dense output).
    batch, in_features = 8, 32
    hidden_dims = [32, 64, 128]

    key = jax.random.PRNGKey(0)
    key, kx = jax.random.split(key)
    x = jax.random.normal(kx, (batch, in_features), jnp.float32)
    params = init_params(key, in_features, hidden_dims)

    out = mfm_encoder_forward(x, params)
    out = jax.block_until_ready(out)

    ref = reference_forward(x, params)
    assert out.shape == (batch, hidden_dims[-1]), out.shape
    assert jnp.allclose(out, ref, rtol=5e-2, atol=5e-2), (
        float(jnp.max(jnp.abs(out - ref))))

    print("KERNEL_OK")
</pallas_src>

<mosaic_0001>
module attributes {stable_mosaic.version = 11 : i64} {
  func.func @_fused_mlp_bn_relu_kernel(%arg0: memref<8x32xbf16, #tpu.memory_space<vmem>>, %arg1: memref<32x32xbf16, #tpu.memory_space<vmem>>, %arg2: memref<1x32xf32, #tpu.memory_space<vmem>>, %arg3: memref<1x32xf32, #tpu.memory_space<vmem>>, %arg4: memref<32x64xbf16, #tpu.memory_space<vmem>>, %arg5: memref<1x64xf32, #tpu.memory_space<vmem>>, %arg6: memref<1x64xf32, #tpu.memory_space<vmem>>, %arg7: memref<64x128xbf16, #tpu.memory_space<vmem>>, %arg8: memref<1x128xf32, #tpu.memory_space<vmem>>, %arg9: memref<1x128xf32, #tpu.memory_space<vmem>>, %arg10: memref<8x128xf32, #tpu.memory_space<vmem>>) attributes {dimension_semantics = [], scalar_prefetch = 0 : i64, scratch_operands = 0 : i64, tpu.core_type = #tpu.core_type<tc>} {
    %c0 = arith.constant 0 : index
    %c0_0 = arith.constant 0 : index
    %0 = vector.load %arg0[%c0, %c0_0] : memref<8x32xbf16, #tpu.memory_space<vmem>>, vector<8x32xbf16>
    %c0_1 = arith.constant 0 : index
    %c0_2 = arith.constant 0 : index
    %1 = vector.load %arg1[%c0_1, %c0_2] : memref<32x32xbf16, #tpu.memory_space<vmem>>, vector<32x32xbf16>
    %cst = arith.constant dense<0.000000e+00> : vector<8x32xf32>
    %2 = tpu.matmul %0, %1, %cst {dimension_numbers = #tpu.dot_dimension_numbers<[1], [0], [0], [1], [0, 0, 1, 1], [], []>} : vector<8x32xbf16>, vector<32x32xbf16>, vector<8x32xf32> -> vector<8x32xf32>
    %cst_3 = arith.constant dense<0.000000e+00> : vector<32xf32>
    %3 = vector.multi_reduction <add>, %2, %cst_3 [0] : vector<8x32xf32> to vector<32xf32>
    %4 = vector.shape_cast %3 : vector<32xf32> to vector<1x32xf32>
    %cst_4 = arith.constant 1.250000e-01 : f32
    %5 = vector.broadcast %cst_4 : f32 to vector<1x32xf32>
    %6 = arith.mulf %4, %5 : vector<1x32xf32>
    %7 = arith.mulf %2, %2 : vector<8x32xf32>
    %cst_5 = arith.constant dense<0.000000e+00> : vector<32xf32>
    %8 = vector.multi_reduction <add>, %7, %cst_5 [0] : vector<8x32xf32> to vector<32xf32>
    %9 = vector.shape_cast %8 : vector<32xf32> to vector<1x32xf32>
    %cst_6 = arith.constant 1.250000e-01 : f32
    %10 = vector.broadcast %cst_6 : f32 to vector<1x32xf32>
    %11 = arith.mulf %9, %10 : vector<1x32xf32>
    %12 = arith.mulf %6, %6 : vector<1x32xf32>
    %13 = arith.subf %11, %12 : vector<1x32xf32>
    %c0_7 = arith.constant 0 : index
    %c0_8 = arith.constant 0 : index
    %14 = vector.load %arg2[%c0_7, %c0_8] : memref<1x32xf32, #tpu.memory_space<vmem>>, vector<1x32xf32>
    %cst_9 = arith.constant 9.99999974E-6 : f32
    %15 = vector.broadcast %cst_9 : f32 to vector<1x32xf32>
    %16 = arith.addf %13, %15 : vector<1x32xf32>
    %17 = math.rsqrt %16 : vector<1x32xf32>
    %18 = arith.mulf %14, %17 : vector<1x32xf32>
    %c0_10 = arith.constant 0 : index
    %c0_11 = arith.constant 0 : index
    %19 = vector.load %arg3[%c0_10, %c0_11] : memref<1x32xf32, #tpu.memory_space<vmem>>, vector<1x32xf32>
    %20 = arith.mulf %6, %18 : vector<1x32xf32>
    %21 = arith.subf %19, %20 : vector<1x32xf32>
    %22 = vector.broadcast %18 : vector<1x32xf32> to vector<8x32xf32>
    %23 = arith.mulf %2, %22 : vector<8x32xf32>
    %24 = vector.broadcast %21 : vector<1x32xf32> to vector<8x32xf32>
    %25 = arith.addf %23, %24 : vector<8x32xf32>
    %cst_12 = arith.constant 0.000000e+00 : f32
    %26 = vector.broadcast %cst_12 : f32 to vector<8x32xf32>
    %27 = arith.maximumf %25, %26 : vector<8x32xf32>
    %28 = arith.truncf %27 : vector<8x32xf32> to vector<8x32xbf16>
    %c0_13 = arith.constant 0 : index
    %c0_14 = arith.constant 0 : index
    %29 = vector.load %arg4[%c0_13, %c0_14] : memref<32x64xbf16, #tpu.memory_space<vmem>>, vector<32x64xbf16>
    %cst_15 = arith.constant dense<0.000000e+00> : vector<8x64xf32>
    %30 = tpu.matmul %28, %29, %cst_15 {dimension_numbers = #tpu.dot_dimension_numbers<[1], [0], [0], [1], [0, 0, 1, 1], [], []>} : vector<8x32xbf16>, vector<32x64xbf16>, vector<8x64xf32> -> vector<8x64xf32>
    %cst_16 = arith.constant dense<0.000000e+00> : vector<64xf32>
    %31 = vector.multi_reduction <add>, %30, %cst_16 [0] : vector<8x64xf32> to vector<64xf32>
    %32 = vector.shape_cast %31 : vector<64xf32> to vector<1x64xf32>
    %cst_17 = arith.constant 1.250000e-01 : f32
    %33 = vector.broadcast %cst_17 : f32 to vector<1x64xf32>
    %34 = arith.mulf %32, %33 : vector<1x64xf32>
    %35 = arith.mulf %30, %30 : vector<8x64xf32>
    %cst_18 = arith.constant dense<0.000000e+00> : vector<64xf32>
    %36 = vector.multi_reduction <add>, %35, %cst_18 [0] : vector<8x64xf32> to vector<64xf32>
    %37 = vector.shape_cast %36 : vector<64xf32> to vector<1x64xf32>
    %cst_19 = arith.constant 1.250000e-01 : f32
    %38 = vector.broadcast %cst_19 : f32 to vector<1x64xf32>
    %39 = arith.mulf %37, %38 : vector<1x64xf32>
    %40 = arith.mulf %34, %34 : vector<1x64xf32>
    %41 = arith.subf %39, %40 : vector<1x64xf32>
    %c0_20 = arith.constant 0 : index
    %c0_21 = arith.constant 0 : index
    %42 = vector.load %arg5[%c0_20, %c0_21] : memref<1x64xf32, #tpu.memory_space<vmem>>, vector<1x64xf32>
    %cst_22 = arith.constant 9.99999974E-6 : f32
    %43 = vector.broadcast %cst_22 : f32 to vector<1x64xf32>
    %44 = arith.addf %41, %43 : vector<1x64xf32>
    %45 = math.rsqrt %44 : vector<1x64xf32>
    %46 = arith.mulf %42, %45 : vector<1x64xf32>
    %c0_23 = arith.constant 0 : index
    %c0_24 = arith.constant 0 : index
    %47 = vector.load %arg6[%c0_23, %c0_24] : memref<1x64xf32, #tpu.memory_space<vmem>>, vector<1x64xf32>
    %48 = arith.mulf %34, %46 : vector<1x64xf32>
    %49 = arith.subf %47, %48 : vector<1x64xf32>
    %50 = vector.broadcast %46 : vector<1x64xf32> to vector<8x64xf32>
    %51 = arith.mulf %30, %50 : vector<8x64xf32>
    %52 = vector.broadcast %49 : vector<1x64xf32> to vector<8x64xf32>
    %53 = arith.addf %51, %52 : vector<8x64xf32>
    %cst_25 = arith.constant 0.000000e+00 : f32
    %54 = vector.broadcast %cst_25 : f32 to vector<8x64xf32>
    %55 = arith.maximumf %53, %54 : vector<8x64xf32>
    %56 = arith.truncf %55 : vector<8x64xf32> to vector<8x64xbf16>
    %c0_26 = arith.constant 0 : index
    %c0_27 = arith.constant 0 : index
    %57 = vector.load %arg7[%c0_26, %c0_27] : memref<64x128xbf16, #tpu.memory_space<vmem>>, vector<64x128xbf16>
    %cst_28 = arith.constant dense<0.000000e+00> : vector<8x128xf32>
    %58 = tpu.matmul %56, %57, %cst_28 {dimension_numbers = #tpu.dot_dimension_numbers<[1], [0], [0], [1], [0, 0, 1, 1], [], []>} : vector<8x64xbf16>, vector<64x128xbf16>, vector<8x128xf32> -> vector<8x128xf32>
    %cst_29 = arith.constant dense<0.000000e+00> : vector<128xf32>
    %59 = vector.multi_reduction <add>, %58, %cst_29 [0] : vector<8x128xf32> to vector<128xf32>
    %60 = vector.shape_cast %59 : vector<128xf32> to vector<1x128xf32>
    %cst_30 = arith.constant 1.250000e-01 : f32
    %61 = vector.broadcast %cst_30 : f32 to vector<1x128xf32>
    %62 = arith.mulf %60, %61 : vector<1x128xf32>
    %63 = arith.mulf %58, %58 : vector<8x128xf32>
    %cst_31 = arith.constant dense<0.000000e+00> : vector<128xf32>
    %64 = vector.multi_reduction <add>, %63, %cst_31 [0] : vector<8x128xf32> to vector<128xf32>
    %65 = vector.shape_cast %64 : vector<128xf32> to vector<1x128xf32>
    %cst_32 = arith.constant 1.250000e-01 : f32
    %66 = vector.broadcast %cst_32 : f32 to vector<1x128xf32>
    %67 = arith.mulf %65, %66 : vector<1x128xf32>
    %68 = arith.mulf %62, %62 : vector<1x128xf32>
    %69 = arith.subf %67, %68 : vector<1x128xf32>
    %c0_33 = arith.constant 0 : index
    %c0_34 = arith.constant 0 : index
    %70 = vector.load %arg8[%c0_33, %c0_34] : memref<1x128xf32, #tpu.memory_space<vmem>>, vector<1x128xf32>
    %cst_35 = arith.constant 9.99999974E-6 : f32
    %71 = vector.broadcast %cst_35 : f32 to vector<1x128xf32>
    %72 = arith.addf %69, %71 : vector<1x128xf32>
    %73 = math.rsqrt %72 : vector<1x128xf32>
    %74 = arith.mulf %70, %73 : vector<1x128xf32>
    %c0_36 = arith.constant 0 : index
    %c0_37 = arith.constant 0 : index
    %75 = vector.load %arg9[%c0_36, %c0_37] : memref<1x128xf32, #tpu.memory_space<vmem>>, vector<1x128xf32>
    %76 = arith.mulf %62, %74 : vector<1x128xf32>
    %77 = arith.subf %75, %76 : vector<1x128xf32>
    %78 = vector.broadcast %74 : vector<1x128xf32> to vector<8x128xf32>
    %79 = arith.mulf %58, %78 : vector<8x128xf32>
    %80 = vector.broadcast %77 : vector<1x128xf32> to vector<8x128xf32>
    %81 = arith.addf %79, %80 : vector<8x128xf32>
    %cst_38 = arith.constant 0.000000e+00 : f32
    %82 = vector.broadcast %cst_38 : f32 to vector<8x128xf32>
    %83 = arith.maximumf %81, %82 : vector<8x128xf32>
    %c0_39 = arith.constant 0 : index
    %c0_40 = arith.constant 0 : index
    %84 = vector.load %arg10[%c0_39, %c0_40] : memref<8x128xf32, #tpu.memory_space<vmem>>, vector<8x128xf32>
    tpu.vector_store %arg10[%c0_39, %c0_40], %83 {strides = array<i32>} : memref<8x128xf32, #tpu.memory_space<vmem>>, vector<8x128xf32>,
    return
  }
}

</mosaic_0001>

<llo_original>
// kernel: tpu_custom_call.1
$region0: #{tpu_custom_call.1}
  #allocation0 [shape = 'u32[]', space=smem, size = 0x4, offset = 0x4, fixed_abs, tag = 'smem constant byte address 0x4 - core index']
  #allocation1 [shape = 'u32[144,128]{1,0:T(1,128)}', space=vmem, size = 0x12000, scoped, tag = 'internal scratch']
  %s0 = inlined_call_operand.hbm [shape: bf16[8,32], index: 0, kind: input, shape index: {}]
  %s1 = inlined_call_operand.hbm [shape: bf16[32,32], index: 1, kind: input, shape index: {}]
  %s2 = inlined_call_operand.vmem [shape: f32[1,32], index: 2, kind: input, shape index: {}]
  %s3 = inlined_call_operand.vmem [shape: f32[1,32], index: 3, kind: input, shape index: {}]
  %s4 = inlined_call_operand.hbm [shape: bf16[32,64], index: 4, kind: input, shape index: {}]
  %s5 = inlined_call_operand.vmem [shape: f32[1,64], index: 5, kind: input, shape index: {}]
  %s6 = inlined_call_operand.vmem [shape: f32[1,64], index: 6, kind: input, shape index: {}]
  %s7 = inlined_call_operand.hbm [shape: bf16[64,128], index: 7, kind: input, shape index: {}]
  %s8 = inlined_call_operand.vmem [shape: f32[1,128], index: 8, kind: input, shape index: {}]
  %s9 = inlined_call_operand.vmem [shape: f32[1,128], index: 9, kind: input, shape index: {}]
  %s10 = inlined_call_operand.hbm [shape: f32[8,128], index: 10, kind: output, shape index: {}]
  %s11 = sld [smem:[#allocation0]]
  $region66: #{tpu_custom_call.1} parent=0
    _
  %s13 = ssub.s32 1, %s11
  %s14 = scalar_select 0, %s13, %s11
  $region1: #{tpu_custom_call.1} parent=0
    #allocation2 [shape = 'u8[2048]{0}', space=vmem, size = 0x800, scoped, tag = 'input window, operand 0, single buffered']
    #allocation3 [shape = 's32[1]{0}', space=sflag, size = 0x4, scoped, tag = 'scoped memory for tpu_custom_call.1']
    #allocation4 [shape = 's32[1]{0}', space=sflag, size = 0x4, scoped, tag = 'scoped memory for tpu_custom_call.1']
    #allocation5 [shape = 'u8[8192]{0}', space=vmem, size = 0x2000, scoped, tag = 'input window, operand 1, single buffered']
    #allocation6 [shape = 's32[1]{0}', space=sflag, size = 0x4, scoped, tag = 'scoped memory for tpu_custom_call.1']
    #allocation7 [shape = 'u8[8192]{0}', space=vmem, size = 0x2000, scoped, tag = 'input window, operand 4, single buffered']
    #allocation8 [shape = 'u8[16384]{0}', space=vmem, size = 0x4000, scoped, tag = 'input window, operand 7, single buffered']
    #allocation9 [shape = 's32[1]{0}', space=sflag, size = 0x4, scoped, tag = 'scoped memory for tpu_custom_call.1']
    #allocation10 [shape = 'u8[4096]{0}', space=vmem, size = 0x1000, scoped, tag = 'output window, operand 0, single buffered']
    %15 = vsyncpa [#allocation3], 0
    %16 = vsyncpa [#allocation6], 0
    %17 = vsyncpa [#allocation9], 0
    %18 = vsyncpa [#allocation4], 0
    // Predicated region
    $region2: #{tpu_custom_call.1} parent=1 // pred_check
      _
    $region3: #{tpu_custom_call.1} parent=1 // pred_check_branch
      %20 = sbr.rel (0) target = $region5
    $region4: #{tpu_custom_call.1} parent=1 // pred_region
      %s22 = ssub.s32 64, 64
      %23 = vsyncadd [#allocation3], %s22
      %s25 = sshll.u32 [#allocation2], 4
      %s26 = int_to_ptr.vmem [resolvable:$true] %s25
      %28 = dma.hbm_to_vmem [thread:$0]  %s0, 64, %s26, [#allocation3]
    $region5: #{tpu_custom_call.1} parent=1 // pred_fallthru
      _
    // Predicated region
    $region6: #{tpu_custom_call.1} parent=1 // pred_check
      _
    $region7: #{tpu_custom_call.1} parent=1 // pred_check_branch
      %30 = sbr.rel (0) target = $region9
    $region8: #{tpu_custom_call.1} parent=1 // pred_region
      %s32 = ssub.s32 256, 256
      %33 = vsyncadd [#allocation6], %s32
      %s34 = sshll.u32 [#allocation5], 4
      %s35 = int_to_ptr.vmem [resolvable:$true] %s34
      %40 = dma.hbm_to_vmem [thread:$0]  %s1, 256, %s35, [#allocation6], 64, 64, 4
    $region9: #{tpu_custom_call.1} parent=1 // pred_fallthru
      _
    // Predicated region
    $region10: #{tpu_custom_call.1} parent=1 // pred_check
      _
    $region11: #{tpu_custom_call.1} parent=1 // pred_check_branch
      %42 = sbr.rel (0) target = $region13
    $region12: #{tpu_custom_call.1} parent=1 // pred_region
      _
    $region13: #{tpu_custom_call.1} parent=1 // pred_fallthru
      _
    // Predicated region
    $region14: #{tpu_custom_call.1} parent=1 // pred_check
      _
    $region15: #{tpu_custom_call.1} parent=1 // pred_check_branch
      %44 = sbr.rel (0) target = $region17
    $region16: #{tpu_custom_call.1} parent=1 // pred_region
      _
    $region17: #{tpu_custom_call.1} parent=1 // pred_fallthru
      _
    // Predicated region
    $region18: #{tpu_custom_call.1} parent=1 // pred_check
      _
    $region19: #{tpu_custom_call.1} parent=1 // pred_check_branch
      %46 = sbr.rel (0) target = $region21
    $region20: #{tpu_custom_call.1} parent=1 // pred_region
      %s48 = ssub.s32 256, 256
      %49 = vsyncadd [#allocation6], %s48
      %s50 = sshll.u32 [#allocation7], 4
      %s51 = int_to_ptr.vmem [resolvable:$true] %s50
      %56 = dma.hbm_to_vmem [thread:$0]  %s4, 256, %s51, [#allocation6], 64, 64, 4
    $region21: #{tpu_custom_call.1} parent=1 // pred_fallthru
      _
    // Predicated region
    $region22: #{tpu_custom_call.1} parent=1 // pred_check
      _
    $region23: #{tpu_custom_call.1} parent=1 // pred_check_branch
      %58 = sbr.rel (0) target = $region25
    $region24: #{tpu_custom_call.1} parent=1 // pred_region
      _
    $region25: #{tpu_custom_call.1} parent=1 // pred_fallthru
      _
    // Predicated region
    $region26: #{tpu_custom_call.1} parent=1 // pred_check
      _
    $region27: #{tpu_custom_call.1} parent=1 // pred_check_branch
      %60 = sbr.rel (0) target = $region29
    $region28: #{tpu_custom_call.1} parent=1 // pred_region
      _
    $region29: #{tpu_custom_call.1} parent=1 // pred_fallthru
      _
    // Predicated region
    $region30: #{tpu_custom_call.1} parent=1 // pred_check
      _
    $region31: #{tpu_custom_call.1} parent=1 // pred_check_branch
      %62 = sbr.rel (0) target = $region33
    $region32: #{tpu_custom_call.1} parent=1 // pred_region
      %s64 = ssub.s32 512, 512
      %65 = vsyncadd [#allocation9], %s64
      %s66 = sshll.u32 [#allocation8], 4
      %s67 = int_to_ptr.vmem [resolvable:$true] %s66
      %72 = dma.hbm_to_vmem [thread:$0]  %s7, 512, %s67, [#allocation9], 64, 64, 4
    $region33: #{tpu_custom_call.1} parent=1 // pred_fallthru
      _
    // Predicated region
    $region34: #{tpu_custom_call.1} parent=1 // pred_check
      _
    $region35: #{tpu_custom_call.1} parent=1 // pred_check_branch
      %74 = sbr.rel (0) target = $region37
    $region36: #{tpu_custom_call.1} parent=1 // pred_region
      _
    $region37: #{tpu_custom_call.1} parent=1 // pred_fallthru
      _
    // Predicated region
    $region38: #{tpu_custom_call.1} parent=1 // pred_check
      _
    $region39: #{tpu_custom_call.1} parent=1 // pred_check_branch
      %76 = sbr.rel (0) target = $region41
    $region40: #{tpu_custom_call.1} parent=1 // pred_region
      _
    $region41: #{tpu_custom_call.1} parent=1 // pred_fallthru
      _
    // Predicated region
    $region42: #{tpu_custom_call.1} parent=1 // pred_check
      _
    $region43: #{tpu_custom_call.1} parent=1 // pred_check_branch
      %78 = sbr.rel (0) target = $region45
    $region44: #{tpu_custom_call.1} parent=1 // pred_region
      %79 = dma.done [#allocation3], 64
    $region45: #{tpu_custom_call.1} parent=1 // pred_fallthru
      _
    // Predicated region
    $region46: #{tpu_custom_call.1} parent=1 // pred_check
      _
    $region47: #{tpu_custom_call.1} parent=1 // pred_check_branch
      %81 = sbr.rel (0) target = $region49
    $region48: #{tpu_custom_call.1} parent=1 // pred_region
      %82 = dma.done [#allocation6], 256
    $region49: #{tpu_custom_call.1} parent=1 // pred_fallthru
      _
    // Predicated region
    $region50: #{tpu_custom_call.1} parent=1 // pred_check
      _
    $region51: #{tpu_custom_call.1} parent=1 // pred_check_branch
      %84 = sbr.rel (0) target = $region53
    $region52: #{tpu_custom_call.1} parent=1 // pred_region
      %85 = dma.done [#allocation6], 256
    $region53: #{tpu_custom_call.1} parent=1 // pred_fallthru
      _
    // Predicated region
    $region54: #{tpu_custom_call.1} parent=1 // pred_check
      _
    $region55: #{tpu_custom_call.1} parent=1 // pred_check_branch
      %87 = sbr.rel (0) target = $region57
    $region56: #{tpu_custom_call.1} parent=1 // pred_region
      %88 = dma.done [#allocation9], 512
    $region57: #{tpu_custom_call.1} parent=1 // pred_fallthru
      _
    %v90 = vld [vmem:[#allocation2] sm:$0xf]
    %v91 = vld [vmem:[#allocation5] sm:$0xf]
    %v92 = vld [vmem:[#allocation5 + $0x4] sm:$0xf]
    %v93 = vld [vmem:[#allocation5 + $0x8] sm:$0xf]
    %v94 = vld [vmem:[#allocation5 + $0xc] sm:$0xf]
    %v99 = vunpack.c.l.b16 %v91
    %v100 = vunpack.c.l.b16 %v92
    %v101 = vunpack.c.l.b16 %v93
    %v102 = vunpack.c.l.b16 %v94
    %v103 = vpack.c.b16 %v100, %v99
    %v104 = vpack.c.b16 %v102, %v101
    %vm107 = vcmask 261120
    %v109 = vsel %vm107, %v90, 0
    %111 = vmatprep.subr.bf16.mxu0 0
    %112 = vmatpush1.bf16.msra.mxu0 0
    %113 = vmatprep.subr.bf16.mxu0 0
    %114 = vmatpush1.bf16.msra.mxu0 0
    %115 = vmatprep.subr.bf16.mxu0 0
    %116 = vmatpush1.bf16.msra.mxu0 0
    %117 = vmatprep.subr.bf16.mxu0 0
    %118 = vmatpush1.bf16.msra.mxu0 0
    %119 = vmatprep.subr.bf16.mxu0 0
    %120 = vmatpush1.bf16.msra.mxu0 0
    %121 = vmatprep.subr.bf16.mxu0 0
    %122 = vmatpush1.bf16.msra.mxu0 0
    %123 = vmatprep.subr.bf16.mxu0 0
    %124 = vmatpush1.bf16.msra.mxu0 %v104
    %125 = vmatprep.subr.bf16.mxu0 0
    %126 = vmatpush1.bf16.msra.mxu0 %v103
    %127 = vmatprep.subr.bf16.mxu0 0
    %128 = vmatpush2.bf16.msra.mxu0 0
    %129 = vmatprep.subr.bf16.mxu0 0
    %130 = vmatpush2.bf16.msra.mxu0 0
    %131 = vmatprep.subr.bf16.mxu0 0
    %132 = vmatpush2.bf16.msra.mxu0 0
    %133 = vmatprep.subr.bf16.mxu0 0
    %134 = vmatpush2.bf16.msra.mxu0 0
    %135 = vmatprep.subr.bf16.mxu0 0
    %136 = vmatpush2.bf16.msra.mxu0 0
    %137 = vmatprep.subr.bf16.mxu0 0
    %138 = vmatpush2.bf16.msra.mxu0 0
    %139 = vmatprep.subr.bf16.mxu0 0
    %140 = vmatpush2.bf16.msra.mxu0 0
    %141 = vmatprep.subr.bf16.mxu0 0
    %142 = vmatpush2.bf16.msra.mxu0 0
    %143 = vmatprep.mubr.bf16.mxu0 0
    %144 = vmatmul.mubr.bf16.gmra.mxu0 %v109
    %v145 = vpop.f32.mrf.mxu0
    %v146 = vadd.f32 0.0, %v145
    %v147 = vpop.f32.mrf.mxu0
    %v148 = vpop.f32.mrf.mxu0
    %v149 = vpop.f32.mrf.mxu0
    %150 = vdwg.mxu0
    %v151 = vsel %vm107, %v146, 0.0
    %v152 = vrot.slane %v151, 4
    %v153 = vadd.f32 %v151, %v152
    %v154 = vrot.slane %v153, 2
    %v155 = vadd.f32 %v153, %v154
    %v156 = vrot.slane %v155, 1
    %v157 = vadd.f32 %v155, %v156
    %v158 = vmul.f32 %v157, 0.125
    %v159 = vmul.f32 %v146, %v146
    %v160 = vsel %vm107, %v159, 0.0
    %v161 = vrot.slane %v160, 4
    %v162 = vadd.f32 %v160, %v161
    %v163 = vrot.slane %v162, 2
    %v164 = vadd.f32 %v162, %v163
    %v165 = vrot.slane %v164, 1
    %v166 = vadd.f32 %v164, %v165
    %v167 = vmul.f32 %v166, 0.125
    %v168 = vmul.f32 %v158, %v158
    %v169 = vsub.f32 %v167, %v168
    %v170 = vld [vmem:[%s2] sm:$0x1]
    %v171 = vadd.f32 %v169, 1e-05
    %v172 = vrsqrt.pop %v171
    %v173 = vmul.f32 %v170, %v172
    %v174 = vld [vmem:[%s3] sm:$0x1]
    %v175 = vmul.f32 %v158, %v173
    %v176 = vsub.f32 %v174, %v175
    %v178 = vlaneseq
    %v179 = vshrl.u32 %v178, 7
    %v180 = vsub.s32 0, %v179
    %v181 = vrot.slane %v173, %v180
    %v183 = vmul.f32 %v146, %v181
    %v185 = vlaneseq
    %v186 = vshrl.u32 %v185, 7
    %v187 = vsub.s32 0, %v186
    %v188 = vrot.slane %v176, %v187
    %v190 = vadd.f32 %v183, %v188
    %v191 = vmax.f32 %v190, 0.0
    %v192 = vpack.c.bf16 %v191, %v191
    %v193 = vld [vmem:[#allocation7] sm:$0xf]
    %v194 = vld [vmem:[#allocation7 + $0x4] sm:$0xf]
    %v195 = vld [vmem:[#allocation7 + $0x8] sm:$0xf]
    %v196 = vld [vmem:[#allocation7 + $0xc] sm:$0xf]
    %v201 = vunpack.c.l.b16 %v193
    %v202 = vunpack.c.l.b16 %v194
    %v203 = vunpack.c.l.b16 %v195
    %v204 = vunpack.c.l.b16 %v196
    %v205 = vpack.c.b16 %v202, %v201
    %v206 = vpack.c.b16 %v204, %v203
    %v210 = vsel %vm107, %v192, 0
    %212 = vmatprep.subr.bf16.mxu0 0
    %213 = vmatpush1.bf16.msra.mxu0 0
    %214 = vmatprep.subr.bf16.mxu0 0
    %215 = vmatpush1.bf16.msra.mxu0 0
    %216 = vmatprep.subr.bf16.mxu0 0
    %217 = vmatpush1.bf16.msra.mxu0 0
    %218 = vmatprep.subr.bf16.mxu0 0
    %219 = vmatpush1.bf16.msra.mxu0 0
    %220 = vmatprep.subr.bf16.mxu0 0
    %221 = vmatpush1.bf16.msra.mxu0 0
    %222 = vmatprep.subr.bf16.mxu0 0
    %223 = vmatpush1.bf16.msra.mxu0 0
    %224 = vmatprep.subr.bf16.mxu0 0
    %225 = vmatpush1.bf16.msra.mxu0 %v206
    %226 = vmatprep.subr.bf16.mxu0 0
    %227 = vmatpush1.bf16.msra.mxu0 %v205
    %228 = vmatprep.subr.bf16.mxu0 0
    %229 = vmatpush2.bf16.msra.mxu0 0
    %230 = vmatprep.subr.bf16.mxu0 0
    %231 = vmatpush2.bf16.msra.mxu0 0
    %232 = vmatprep.subr.bf16.mxu0 0
    %233 = vmatpush2.bf16.msra.mxu0 0
    %234 = vmatprep.subr.bf16.mxu0 0
    %235 = vmatpush2.bf16.msra.mxu0 0
    %236 = vmatprep.subr.bf16.mxu0 0
    %237 = vmatpush2.bf16.msra.mxu0 0
    %238 = vmatprep.subr.bf16.mxu0 0
    %239 = vmatpush2.bf16.msra.mxu0 0
    %240 = vmatprep.subr.bf16.mxu0 0
    %241 = vmatpush2.bf16.msra.mxu0 0
    %242 = vmatprep.subr.bf16.mxu0 0
    %243 = vmatpush2.bf16.msra.mxu0 0
    %244 = vmatprep.mubr.bf16.mxu0 0
    %245 = vmatmul.mubr.bf16.gmra.mxu0 %v210
    %v246 = vpop.f32.mrf.mxu0
    %v247 = vadd.f32 0.0, %v246
    %v248 = vpop.f32.mrf.mxu0
    %v249 = vpop.f32.mrf.mxu0
    %v250 = vpop.f32.mrf.mxu0
    %251 = vdwg.mxu0
    %vm252 = vcmask 523264
    %v253 = vsel %vm252, %v247, 0.0
    %v254 = vrot.slane %v253, 4
    %v255 = vadd.f32 %v253, %v254
    %v256 = vrot.slane %v255, 2
    %v257 = vadd.f32 %v255, %v256
    %v258 = vrot.slane %v257, 1
    %v259 = vadd.f32 %v257, %v258
    %v260 = vmul.f32 %v259, 0.125
    %v261 = vmul.f32 %v247, %v247
    %v262 = vsel %vm252, %v261, 0.0
    %v263 = vrot.slane %v262, 4
    %v264 = vadd.f32 %v262, %v263
    %v265 = vrot.slane %v264, 2
    %v266 = vadd.f32 %v264, %v265
    %v267 = vrot.slane %v266, 1
    %v268 = vadd.f32 %v266, %v267
    %v269 = vmul.f32 %v268, 0.125
    %v270 = vmul.f32 %v260, %v260
    %v271 = vsub.f32 %v269, %v270
    %v272 = vld [vmem:[%s5] sm:$0x1]
    %v273 = vadd.f32 %v271, 1e-05
    %v274 = vrsqrt.pop %v273
    %v275 = vmul.f32 %v272, %v274
    %v276 = vld [vmem:[%s6] sm:$0x1]
    %v277 = vmul.f32 %v260, %v275
    %v278 = vsub.f32 %v276, %v277
    %v280 = vlaneseq
    %v281 = vshrl.u32 %v280, 7
    %v282 = vsub.s32 0, %v281
    %v283 = vrot.slane %v275, %v282
    %v285 = vmul.f32 %v247, %v283
    %v287 = vlaneseq
    %v288 = vshrl.u32 %v287, 7
    %v289 = vsub.s32 0, %v288
    %v290 = vrot.slane %v278, %v289
    %v292 = vadd.f32 %v285, %v290
    %v293 = vmax.f32 %v292, 0.0
    %v294 = vpack.c.bf16 %v293, %v293
    %v295 = vld [vmem:[#allocation8] sm:$0xf]
    %v296 = vld [vmem:[#allocation8 + $0x4] sm:$0xf]
    %v297 = vld [vmem:[#allocation8 + $0x8] sm:$0xf]
    %v298 = vld [vmem:[#allocation8 + $0xc] sm:$0xf]
    %v299 = vld [vmem:[#allocation8 + $0x10] sm:$0xf]
    %v300 = vld [vmem:[#allocation8 + $0x14] sm:$0xf]
    %v301 = vld [vmem:[#allocation8 + $0x18] sm:$0xf]
    %v302 = vld [vmem:[#allocation8 + $0x1c] sm:$0xf]
    %v311 = vunpack.c.l.b16 %v295
    %v312 = vunpack.c.l.b16 %v296
    %v313 = vunpack.c.l.b16 %v297
    %v314 = vunpack.c.l.b16 %v298
    %v315 = vunpack.c.l.b16 %v299
    %v316 = vunpack.c.l.b16 %v300
    %v317 = vunpack.c.l.b16 %v301
    %v318 = vunpack.c.l.b16 %v302
    %v319 = vpack.c.b16 %v312, %v311
    %v320 = vpack.c.b16 %v314, %v313
    %v321 = vpack.c.b16 %v316, %v315
    %v322 = vpack.c.b16 %v318, %v317
    %v328 = vsel %vm252, %v294, 0
    %330 = vmatprep.subr.bf16.mxu0 0
    %331 = vmatpush1.bf16.msra.mxu0 0
    %332 = vmatprep.subr.bf16.mxu0 0
    %333 = vmatpush1.bf16.msra.mxu0 0
    %334 = vmatprep.subr.bf16.mxu0 0
    %335 = vmatpush1.bf16.msra.mxu0 0
    %336 = vmatprep.subr.bf16.mxu0 0
    %337 = vmatpush1.bf16.msra.mxu0 0
    %338 = vmatprep.subr.bf16.mxu0 0
    %339 = vmatpush1.bf16.msra.mxu0 %v322
    %340 = vmatprep.subr.bf16.mxu0 0
    %341 = vmatpush1.bf16.msra.mxu0 %v321
    %342 = vmatprep.subr.bf16.mxu0 0
    %343 = vmatpush1.bf16.msra.mxu0 %v320
    %344 = vmatprep.subr.bf16.mxu0 0
    %345 = vmatpush1.bf16.msra.mxu0 %v319
    %346 = vmatprep.subr.bf16.mxu0 0
    %347 = vmatpush2.bf16.msra.mxu0 0
    %348 = vmatprep.subr.bf16.mxu0 0
    %349 = vmatpush2.bf16.msra.mxu0 0
    %350 = vmatprep.subr.bf16.mxu0 0
    %351 = vmatpush2.bf16.msra.mxu0 0
    %352 = vmatprep.subr.bf16.mxu0 0
    %353 = vmatpush2.bf16.msra.mxu0 0
    %354 = vmatprep.subr.bf16.mxu0 0
    %355 = vmatpush2.bf16.msra.mxu0 0
    %356 = vmatprep.subr.bf16.mxu0 0
    %357 = vmatpush2.bf16.msra.mxu0 0
    %358 = vmatprep.subr.bf16.mxu0 0
    %359 = vmatpush2.bf16.msra.mxu0 0
    %360 = vmatprep.subr.bf16.mxu0 0
    %361 = vmatpush2.bf16.msra.mxu0 0
    %362 = vmatprep.mubr.bf16.mxu0 0
    %363 = vmatmul.mubr.bf16.gmra.mxu0 %v328
    %v364 = vpop.f32.mrf.mxu0
    %v365 = vadd.f32 0.0, %v364
    %v366 = vpop.f32.mrf.mxu0
    %v367 = vpop.f32.mrf.mxu0
    %v368 = vpop.f32.mrf.mxu0
    %369 = vdwg.mxu0
    %v370 = vrot.slane %v365, 4
    %v371 = vadd.f32 %v365, %v370
    %v372 = vrot.slane %v371, 2
    %v373 = vadd.f32 %v371, %v372
    %v374 = vrot.slane %v373, 1
    %v375 = vadd.f32 %v373, %v374
    %v376 = vmul.f32 %v375, 0.125
    %v377 = vmul.f32 %v365, %v365
    %v378 = vrot.slane %v377, 4
    %v379 = vadd.f32 %v377, %v378
    %v380 = vrot.slane %v379, 2
    %v381 = vadd.f32 %v379, %v380
    %v382 = vrot.slane %v381, 1
    %v383 = vadd.f32 %v381, %v382
    %v384 = vmul.f32 %v383, 0.125
    %v385 = vmul.f32 %v376, %v376
    %v386 = vsub.f32 %v384, %v385
    %v387 = vld [vmem:[%s8] sm:$0x1]
    %v388 = vadd.f32 %v386, 1e-05
    %v389 = vrsqrt.pop %v388
    %v390 = vmul.f32 %v387, %v389
    %v391 = vld [vmem:[%s9] sm:$0x1]
    %v392 = vmul.f32 %v376, %v390
    %v393 = vsub.f32 %v391, %v392
    %v395 = vlaneseq
    %v396 = vshrl.u32 %v395, 7
    %v397 = vsub.s32 0, %v396
    %v398 = vrot.slane %v390, %v397
    %v400 = vmul.f32 %v365, %v398
    %v402 = vlaneseq
    %v403 = vshrl.u32 %v402, 7
    %v404 = vsub.s32 0, %v403
    %v405 = vrot.slane %v393, %v404
    %v407 = vadd.f32 %v400, %v405
    %v408 = vmax.f32 %v407, 0.0
    %409 = vst [vmem:[#allocation10] sm:$0xff] %v408
    // Predicated region
    $region58: #{tpu_custom_call.1} parent=1 // pred_check
      _
    $region59: #{tpu_custom_call.1} parent=1 // pred_check_branch
      %411 = sbr.rel (0) target = $region61
    $region60: #{tpu_custom_call.1} parent=1 // pred_region
      %s413 = ssub.s32 128, 128
      %414 = vsyncadd [#allocation4], %s413
      %s416 = sshll.u32 [#allocation10], 4
      %s417 = int_to_ptr.vmem [resolvable:$true] %s416
      %419 = dma.vmem_to_hbm [thread:$0]  %s417, 128, %s10, [#allocation4]
    $region61: #{tpu_custom_call.1} parent=1 // pred_fallthru
      _
    // Predicated region
    $region62: #{tpu_custom_call.1} parent=1 // pred_check
      _
    $region63: #{tpu_custom_call.1} parent=1 // pred_check_branch
      %421 = sbr.rel (0) target = $region65
    $region64: #{tpu_custom_call.1} parent=1 // pred_region
      %422 = dma.done [#allocation4], 128
    $region65: #{tpu_custom_call.1} parent=1 // pred_fallthru
      _
    %423 = vsyncpa [#allocation3], 1
    %424 = vsyncpa [#allocation6], 1
    %425 = vsyncpa [#allocation9], 1
    %426 = vsyncpa [#allocation4], 1

</llo_original>
